<compile_context>
chip_gen: v7x
topology: tpu7x:2x2x1
jax: 0.10.0
libtpu: 0.0.40
codegen_flags: <defaults>
</compile_context>

<pallas_src>
import functools

import jax
import jax.numpy as jnp
from jax.experimental import pallas as pl
from jax.experimental.pallas import tpu as pltpu

_LANE = 128
_PHYS_TILE_CAP = 4 << 20      # max physical VMEM bytes per input tile (per buffer)
_FAST_PATH_BYTES = 2 << 20    # below this a fused XLA relu+reduce wins


def _round_up(v: int, m: int) -> int:
    return ((v + m - 1) // m) * m


def _round_down(v: int, m: int) -> int:
    return (v // m) * m


def _relu_sum_partial_kernel(x_ref, o_ref, *, k_total, tile_k, mask_tail):
    """One (batch-block, k-block) partial of sum(relu(x), axis=1).

    x_ref: (b_blk, tile_k) input tile in VMEM.
    o_ref: (b_blk, 128) f32 partial-sum slot; the per-row scalar is broadcast
           across all 128 lanes so the store is a full, unmasked vst.
    """
    r = jnp.maximum(x_ref[...].astype(jnp.float32), 0.0)
    if mask_tail:
        # Ragged K: columns past the logical extent of this k-block hold
        # whatever Pallas padded the block with; zero them AFTER the relu so
        # NaN/Inf garbage cannot leak through the max.
        k = pl.program_id(1)
        col = jax.lax.broadcasted_iota(jnp.int32, r.shape, 1)
        r = jnp.where(col < (k_total - k * tile_k), r, 0.0)
    part = jnp.sum(r, axis=1, keepdims=True)             # (b_blk, 1) via XLU
    o_ref[...] = jnp.broadcast_to(part, o_ref.shape)


def toy_model_forward(x: jax.Array, *, force_pallas: bool = False,
                      max_tile_k: int | None = None,
                      max_block_rows: int | None = None) -> jax.Array:
    """Pallas equivalent of ToyModel.forward: sum(relu(x)) over dims 1..ndim-1."""
    # TODO(synk): `self.number_of_passes` is Python-side bookkeeping with no
    # effect on the returned tensor; intentionally not modeled.
    B = x.shape[0]
    K = 1
    for d in x.shape[1:]:
        K *= d
    reduce_axes = tuple(range(1, x.ndim))
    itemsize = jnp.dtype(x.dtype).itemsize

    # Fast path: for small/medium inputs the fixed pallas_call overhead
    # dominates; a fused XLA relu+reduce wins.
    if not force_pallas and B * K * itemsize < _FAST_PATH_BYTES:
        return jnp.sum(jnp.maximum(x, 0), axis=reduce_axes)

    # Sublane packing for the dtype: 8 rows f32, 16 bf16/fp16, 32 int8/fp8.
    packing = max(8, 32 // itemsize)
    k128 = _round_up(K, _LANE)

    # --- batch block ---------------------------------------------------
    # Full batch for small B; otherwise as many packing-row groups as keep a
    # full-K tile under the physical VMEM cap (keeps DMA tiles >= ~1 MiB when
    # K is small and B is large).
    if B <= packing:
        b_blk = B
    else:
        groups = max(1, _PHYS_TILE_CAP // (packing * k128 * itemsize))
        b_blk = min(_round_up(B, packing), groups * packing)
        if max_block_rows is not None:        # test knob
            b_blk = min(b_blk, max(packing, _round_up(max_block_rows, packing)))
    phys_rows = _round_up(b_blk, packing)     # VMEM rows incl. sublane padding

    # --- k block ---------------------------------------------------------
    tile_k = _round_down(_PHYS_TILE_CAP // (phys_rows * itemsize), _LANE)
    tile_k = max(_LANE, min(tile_k, k128))
    if max_tile_k is not None:                # test knob
        tile_k = max(_LANE, min(tile_k, _round_down(max_tile_k, _LANE) or _LANE))

    nb = pl.cdiv(B, b_blk)
    nk = pl.cdiv(K, tile_k)
    mask_tail = (K % tile_k) != 0

    # Flat (B, K) view -- pure metadata reshape, no HBM copy, no padding.
    x2d = x.reshape(B, K)

    kernel = functools.partial(_relu_sum_partial_kernel, k_total=K,
                               tile_k=tile_k, mask_tail=mask_tail)

    partials = pl.pallas_call(
        kernel,
        out_shape=jax.ShapeDtypeStruct((nk, B, _LANE), jnp.float32),
        grid=(nb, nk),
        in_specs=[pl.BlockSpec((b_blk, tile_k), lambda b, k: (b, k))],
        out_specs=pl.BlockSpec((None, b_blk, _LANE), lambda b, k: (k, b, 0)),
        compiler_params=pltpu.CompilerParams(
            # Both axes independent: batch and reduction partials can both be
            # sharded across TensorCores (helps v7x when B is tiny).
            dimension_semantics=("parallel", "parallel"),
            vmem_limit_bytes=24 << 20,
        ),
        cost_estimate=pl.CostEstimate(
            flops=2 * B * K,
            transcendentals=0,
            bytes_accessed=B * K * itemsize + nk * B * _LANE * 4,
        ),
    )(x2d)

    # Tiny (nk, B) reduction of the per-k-block partials, done by XLA.
    out = jnp.sum(partials[:, :, 0], axis=0)
    # Match torch semantics: result dtype follows the input dtype (the sum is
    # accumulated in f32 inside the kernel and cast exactly once here).
    return out.astype(x.dtype)


if __name__ == "__main__":
    key = jax.random.PRNGKey(0)
    ks = jax.random.split(key, 5)

    def ref(xx):
        xf = xx.astype(jnp.float32)
        return jnp.sum(jnp.maximum(xf, 0.0), axis=tuple(range(1, xx.ndim)))

    # 1) Canonical ToyModel shape (B=2, C=4, 16x16); single-tile Pallas path.
    x1 = jax.random.normal(ks[0], (2, 4, 16, 16), dtype=jnp.float32)
    y1 = jax.block_until_ready(toy_model_forward(x1, force_pallas=True))
    assert y1.shape == (2,)
    assert jnp.allclose(y1, ref(x1), rtol=1e-5, atol=1e-4), (y1, ref(x1))

    # 2) Multi-k-block path (per-block partials summed in the wrapper).
    x2 = jax.random.normal(ks[1], (2, 4, 32, 32), dtype=jnp.float32)
    y2 = jax.block_until_ready(
        toy_model_forward(x2, force_pallas=True, max_tile_k=1024))
    assert jnp.allclose(y2, ref(x2), rtol=1e-5, atol=1e-4), (y2, ref(x2))

    # 3) Ragged K (3*9*9 = 243, not a multiple of 128) -> in-kernel tail mask,
    #    no wrapper-side pad, two k blocks.
    x3 = jax.random.normal(ks[2], (2, 3, 9, 9), dtype=jnp.float32)
    y3 = jax.block_until_ready(
        toy_model_forward(x3, force_pallas=True, max_tile_k=128))
    assert jnp.allclose(y3, ref(x3), rtol=1e-5, atol=1e-4), (y3, ref(x3))

    # 4) Batch-blocked path with a ragged final batch block (B=20, b_blk=8).
    x4 = jax.random.normal(ks[3], (20, 4, 8, 8), dtype=jnp.float32)
    y4 = jax.block_until_ready(
        toy_model_forward(x4, force_pallas=True, max_block_rows=8))
    assert y4.shape == (20,)
    assert jnp.allclose(y4, ref(x4), rtol=1e-5, atol=1e-4), (y4, ref(x4))

    # 5) bf16 input (sublane packing 16); f32 accumulation inside the kernel.
    x5 = jax.random.normal(ks[4], (2, 4, 16, 16),
                           dtype=jnp.float32).astype(jnp.bfloat16)
    y5 = jax.block_until_ready(toy_model_forward(x5, force_pallas=True))
    assert y5.dtype == jnp.bfloat16
    assert jnp.allclose(y5.astype(jnp.float32), ref(x5), rtol=2e-2, atol=1.0)

    print("KERNEL_OK")
</pallas_src>

<mosaic_0001>
module attributes {stable_mosaic.version = 11 : i64} {
  func.func @_relu_sum_partial_kernel(%arg0: i32, %arg1: i32, %arg2: memref<2x1024xf32, #tpu.memory_space<vmem>>, %arg3: memref<1x2x128xf32, #tpu.memory_space<vmem>>) attributes {dimension_semantics = [#tpu.dimension_semantics<parallel>, #tpu.dimension_semantics<parallel>], iteration_bounds = array<i64: 1, 1>, scalar_prefetch = 0 : i64, scratch_operands = 0 : i64, tpu.core_type = #tpu.core_type<tc>, window_params = [{transform_indices = @transform_0, window_bounds = array<i64: 2, 1024>}, {transform_indices = @transform_1, window_bounds = array<i64: 1, 2, 128>}]} {
    %c0 = arith.constant 0 : index
    %c0_0 = arith.constant 0 : index
    %0 = vector.load %arg2[%c0, %c0_0] : memref<2x1024xf32, #tpu.memory_space<vmem>>, vector<2x1024xf32>
    %cst = arith.constant 0.000000e+00 : f32
    %1 = vector.broadcast %cst : f32 to vector<2x1024xf32>
    %2 = arith.maximumf %0, %1 : vector<2x1024xf32>
    %cst_1 = arith.constant dense<0.000000e+00> : vector<2xf32>
    %3 = vector.multi_reduction <add>, %2, %cst_1 [1] : vector<2x1024xf32> to vector<2xf32>
    %4 = vector.shape_cast %3 : vector<2xf32> to vector<2x1xf32>
    %5 = vector.shape_cast %4 : vector<2x1xf32> to vector<2x1xf32>
    %6 = vector.broadcast %5 : vector<2x1xf32> to vector<2x128xf32>
    %c0_2 = arith.constant 0 : index
    %c0_3 = arith.constant 0 : index
    %c0_4 = arith.constant 0 : index
    %7 = vector.load %arg3[%c0_2, %c0_3, %c0_4] : memref<1x2x128xf32, #tpu.memory_space<vmem>>, vector<1x2x128xf32>
    %8 = vector.shape_cast %7 : vector<1x2x128xf32> to vector<2x128xf32>
    %9 = vector.shape_cast %6 : vector<2x128xf32> to vector<1x2x128xf32>
    tpu.vector_store %arg3[%c0_2, %c0_3, %c0_4], %9 {strides = array<i32>} : memref<1x2x128xf32, #tpu.memory_space<vmem>>, vector<1x2x128xf32>,
    return
  }
  func.func @transform_0(%arg0: i32, %arg1: i32) -> (i32, i32) {
    %c0_i32 = arith.constant 0 : i32
    return %arg0, %arg1 : i32, i32
  }
  func.func @transform_1(%arg0: i32, %arg1: i32) -> (i32, i32, i32) {
    %c0_i32 = arith.constant 0 : i32
    %c0_i32_0 = arith.constant 0 : i32
    return %arg1, %arg0, %c0_i32 : i32, i32, i32
  }
}

</mosaic_0001>

<llo_original>
// kernel: tpu_custom_call.1
$region0: #{tpu_custom_call.1}
  #allocation0 [shape = 'u32[]', space=smem, size = 0x4, offset = 0x4, fixed_abs, tag = 'smem constant byte address 0x4 - core index']
  #allocation1 [shape = 'u32[144,128]{1,0:T(1,128)}', space=vmem, size = 0x12000, scoped, tag = 'internal scratch']
  %s0 = inlined_call_operand.hbm [shape: f32[2,1024], index: 0, kind: input, shape index: {}]
  %s1 = inlined_call_operand.hbm [shape: f32[1,2,128], index: 1, kind: output, shape index: {}]
  %s2 = sld [smem:[#allocation0]]
  $region18: #{tpu_custom_call.1} parent=0
    _
  %s4 = ssub.s32 1, %s2
  %s5 = scalar_select 0, %s4, %s2
  $region1: #{tpu_custom_call.1} parent=0
    #allocation2 [shape = 'u8[8192]{0}', space=vmem, size = 0x2000, scoped, tag = 'input window, operand 0, single buffered']
    #allocation3 [shape = 's32[1]{0}', space=sflag, size = 0x4, scoped, tag = 'scoped memory for tpu_custom_call.1']
    #allocation4 [shape = 's32[1]{0}', space=sflag, size = 0x4, scoped, tag = 'scoped memory for tpu_custom_call.1']
    #allocation5 [shape = 'u8[1024]{0}', space=vmem, size = 0x400, scoped, tag = 'output window, operand 0, single buffered']
    %6 = vsyncpa [#allocation3], 0
    %7 = vsyncpa [#allocation4], 0
    // Predicated region
    $region2: #{tpu_custom_call.1} parent=1 // pred_check
      _
    $region3: #{tpu_custom_call.1} parent=1 // pred_check_branch
      %9 = sbr.rel (0) target = $region5
    $region4: #{tpu_custom_call.1} parent=1 // pred_region
      %s11 = ssub.s32 256, 256
      %12 = vsyncadd [#allocation3], %s11
      %s14 = sshll.u32 [#allocation2], 4
      %s15 = int_to_ptr.vmem [resolvable:$true] %s14
      %17 = dma.hbm_to_vmem [thread:$0]  %s0, 256, %s15, [#allocation3]
    $region5: #{tpu_custom_call.1} parent=1 // pred_fallthru
      _
    // Predicated region
    $region6: #{tpu_custom_call.1} parent=1 // pred_check
      _
    $region7: #{tpu_custom_call.1} parent=1 // pred_check_branch
      %19 = sbr.rel (0) target = $region9
    $region8: #{tpu_custom_call.1} parent=1 // pred_region
      %20 = dma.done [#allocation3], 256
    $region9: #{tpu_custom_call.1} parent=1 // pred_fallthru
      _
    %v21 = vld [vmem:[#allocation2] sm:$0xff]
    %v22 = vld [vmem:[#allocation2 + $0x8] sm:$0xff]
    %v23 = vmax.f32 %v21, 0.0
    %v24 = vmax.f32 %v22, 0.0
    %v27 = vcombine.high %v23, %v23
    %v29 = vunpack.c.l.s4 1983009808
    %v30 = vunpack.c.0.s8 %v29
    %v31 = vlaneseq
    %v32 = vshrl.u32 %v31, 7
    %v33 = vsub.s32 %v30, %v32
    %v34 = vrot.slane %v23, %v33
    %v36 = vunpack.c.l.s4 1983009808
    %v37 = vunpack.c.0.s8 %v36
    %v38 = vlaneseq
    %v39 = vshrl.u32 %v38, 7
    %v40 = vsub.s32 %v37, %v39
    %v41 = vrot.slane %v27, %v40
    %v42 = vcombine.high %v34, %v34
    %v43 = vcombine.high %v41, %v41
    %v44 = vcombine.high %v24, %v24
    %v46 = vunpack.c.l.s4 1983009808
    %v47 = vunpack.c.0.s8 %v46
    %v48 = vlaneseq
    %v49 = vshrl.u32 %v48, 7
    %v50 = vsub.s32 %v47, %v49
    %v51 = vrot.slane %v24, %v50
    %v53 = vunpack.c.l.s4 1983009808
    %v54 = vunpack.c.0.s8 %v53
    %v55 = vlaneseq
    %v56 = vshrl.u32 %v55, 7
    %v57 = vsub.s32 %v54, %v56
    %v58 = vrot.slane %v44, %v57
    %v59 = vcombine.high %v51, %v51
    %v60 = vcombine.high %v58, %v58
    %vm69 = vcmask 1041408
    %v70 = vsel %vm69, %v34, 0.0
    %v71 = vsel %vm69, %v42, 0.0
    %v72 = vadd.f32 %v70, %v71
    %v73 = vsel %vm69, %v41, 0.0
    %v74 = vadd.f32 %v72, %v73
    %v75 = vsel %vm69, %v43, 0.0
    %v76 = vadd.f32 %v74, %v75
    %v77 = vsel %vm69, %v51, 0.0
    %v78 = vadd.f32 %v76, %v77
    %v79 = vsel %vm69, %v59, 0.0
    %v80 = vadd.f32 %v78, %v79
    %v81 = vsel %vm69, %v58, 0.0
    %v82 = vadd.f32 %v80, %v81
    %v83 = vsel %vm69, %v60, 0.0
    %v84 = vadd.f32 %v82, %v83
    %85 = vadd.xlane.f32.xlu0 %v84
    %v86 = vpop.xlane.xlu0 %85
    %87 = vst [vmem:[#allocation5] sm:$0x3] %v86
    // Predicated region
    $region10: #{tpu_custom_call.1} parent=1 // pred_check
      _
    $region11: #{tpu_custom_call.1} parent=1 // pred_check_branch
      %89 = sbr.rel (0) target = $region13
    $region12: #{tpu_custom_call.1} parent=1 // pred_region
      %s91 = ssub.s32 32, 32
      %92 = vsyncadd [#allocation4], %s91
      %s94 = sshll.u32 [#allocation5], 4
      %s95 = int_to_ptr.vmem [resolvable:$true] %s94
      %97 = dma.vmem_to_hbm [thread:$0]  %s95, 32, %s1, [#allocation4]
    $region13: #{tpu_custom_call.1} parent=1 // pred_fallthru
      _
    // Predicated region
    $region14: #{tpu_custom_call.1} parent=1 // pred_check
      _
    $region15: #{tpu_custom_call.1} parent=1 // pred_check_branch
      %99 = sbr.rel (0) target = $region17
    $region16: #{tpu_custom_call.1} parent=1 // pred_region
      %100 = dma.done [#allocation4], 32
    $region17: #{tpu_custom_call.1} parent=1 // pred_fallthru
      _
    %101 = vsyncpa [#allocation3], 1
    %102 = vsyncpa [#allocation4], 1

</llo_original>
